<compile_context>
chip_gen: v6e
topology: v6e:2x2x1
jax: 0.10.0
libtpu: 0.0.40
codegen_flags: <defaults>
</compile_context>

<pallas_src>
import jax
import jax.numpy as jnp
from jax.experimental import pallas as pl
from jax.experimental.pallas import tpu as pltpu


# ---------------------------------------------------------------------------
# Planning helpers
# ---------------------------------------------------------------------------
def _round_up(x, m):
    return (x + m - 1) // m * m


def _sublane(dtype):
    """Native sublane packing for the second-minor dim of the given dtype."""
    return {4: 8, 2: 16, 1: 32}[jnp.dtype(dtype).itemsize]


def _vmem_budget_bytes():
    """~75% of per-core VMEM (48 MiB on v7x, ~96 MiB on v5e/v6e), safe fallback."""
    try:
        cap = int(pltpu.get_tpu_info().vmem_capacity_bytes)
        if cap <= 0:
            raise ValueError("bad vmem capacity")
    except Exception:
        cap = 64 * 1024 * 1024  # assume the v7x floor if detection fails
    return min((cap * 3) // 4, 112 * 1024 * 1024)


def _default_cout_tile():
    """tn=128 matches v5e's 4x128x128 MXU; 256 suits the 256-wide v6e/v7x MXUs."""
    try:
        kind = jax.devices()[0].device_kind.lower()
    except Exception:
        return 256
    return 128 if ("v5 lite" in kind or "v5e" in kind or "v5lite" in kind) else 256


def _vmem_est(tho, Wd, K4, Wop, tn, in_dt, out_dt):
    """Rough per-step VMEM footprint (double-buffered blocks + live values)."""
    ib, ob = jnp.dtype(in_dt).itemsize, jnp.dtype(out_dt).itemsize
    si, so = _sublane(in_dt), _sublane(out_dt)
    k4l = _round_up(K4, 128)
    inp = 2 * (tho + 1) * _round_up(Wd, si) * k4l * ib      # input window (x2 buf)
    wgt = 2 * 4 * _round_up(K4, si) * tn * ib               # weight tile  (x2 buf)
    out = 2 * tho * _round_up(Wop, so) * tn * ob            # output tile  (x2 buf)
    acc = _round_up(tho * Wop, 8) * tn * 4                  # f32 accumulator value
    tap = 2 * _round_up(tho * Wop, si) * k4l * ib           # live tap operands
    return inp + wgt + out + acc + tap + (2 << 20)


def _plan(Ho, Wo, Cin, Cout, in_dt, out_dt, row_tile_target, cout_tile, budget):
    K4 = 4 * Cin
    Wop = _round_up(Wo, 8)                       # sublane-aligned output width
    Wd = _round_up(Wop + 1, _sublane(in_dt))     # stored width incl. column halo
    Npad = _round_up(Cout, 128)                  # lane-dense output channels

    tn = _round_up(min(cout_tile, Npad), 128) if cout_tile else min(256, Npad)
    while Npad % tn:
        tn -= 128
    tn = max(tn, 128)

    tho = max(1, min(Ho, row_tile_target // Wop))  # ~row_tile_target MXU rows/step
    while _vmem_est(tho, Wd, K4, Wop, tn, in_dt, out_dt) > budget:
        if tho > 1 and tho * Wop > 256:
            tho = max(1, tho // 2)
        elif tn > 128:
            tn = 128
        elif tho > 1:
            tho = max(1, tho // 2)
        else:
            break
    Ho_pad = _round_up(Ho, tho)
    return K4, Wop, Wd, tho, Ho_pad, Npad, tn


# ---------------------------------------------------------------------------
# Data preparation (XLA side; one pass, no 4x im2col duplication)
# ---------------------------------------------------------------------------
def _space_to_depth(x_nhwc, Ho_pad, Wd, in_dt):
    """(B,H,W,C) -> (B, Ho_pad+1, Wd, 4C) with xs[...,(2p+q)C+c]=x_pad[2i+p,2j+q,c]."""
    B, H, W, C = x_nhwc.shape
    Hp, Wp = 2 * (Ho_pad + 1), 2 * Wd
    xp = jnp.pad(x_nhwc, ((0, 0), (1, Hp - 1 - H), (1, Wp - 1 - W), (0, 0)))
    xs = xp.reshape(B, Ho_pad + 1, 2, Wd, 2, C)
    xs = jnp.transpose(xs, (0, 1, 3, 2, 4, 5))          # (B, i, j, p, q, C)
    return xs.reshape(B, Ho_pad + 1, Wd, 4 * C).astype(in_dt)


def _tile_rows_with_halo(xs, tho):
    """(B, Ho_pad+1, Wd, K4) -> (B, n_h, tho+1, Wd, K4), overlap row duplicated."""
    B, R, Wd, K4 = xs.shape                              # R = Ho_pad + 1
    n_h = (R - 1) // tho
    if n_h == 1:
        return xs[:, None]
    idx = (jnp.arange(n_h)[:, None] * tho + jnp.arange(tho + 1)[None, :]).reshape(-1)
    return xs[:, idx].reshape(B, n_h, tho + 1, Wd, K4)


def _prep_weight_bias(weight, bias, Npad, in_dt):
    """OIHW (Cout,Cin,4,4) -> w4[t=2dh+dw, (2p+q)Cin+c, Cout_pad]; f32 bias row."""
    Cout, Cin = weight.shape[0], weight.shape[1]
    w = jnp.transpose(weight, (2, 3, 1, 0))              # (kh, kw, Cin, Cout)
    w = w.reshape(2, 2, 2, 2, Cin, Cout)                 # (dh, p, dw, q, Cin, Cout)
    w = jnp.transpose(w, (0, 2, 1, 3, 4, 5))             # (dh, dw, p, q, Cin, Cout)
    w = w.reshape(4, 4 * Cin, Cout)                      # (t, K4, Cout)
    w = jnp.pad(w, ((0, 0), (0, 0), (0, Npad - Cout))).astype(in_dt)
    b = jnp.pad(bias, (0, Npad - Cout)).reshape(1, Npad).astype(jnp.float32)
    return w, b


# ---------------------------------------------------------------------------
# Pallas kernel: fused direct conv(k=4,s=2,p=1) + bias + ReLU
# ---------------------------------------------------------------------------
def _conv_relu_pallas(xst, w4, brow, *, tho, Wop, tn, out_dtype, vmem_limit):
    B, n_h, thp1, Wd, K4 = xst.shape
    Npad = w4.shape[-1]
    n_n = Npad // tn
    Ho_pad = n_h * tho

    def kernel(x_ref, w_ref, b_ref, o_ref):
        # Value-chain accumulation: bias + 4 MXU matmuls with K = 4*Cin.
        acc = b_ref[...].astype(jnp.float32)                         # (1, tn)
        for t, (dh, dw) in enumerate(((0, 0), (0, 1), (1, 0), (1, 1))):
            tap = x_ref[dh:dh + tho, dw:dw + Wop, :].reshape(tho * Wop, K4)
            acc = acc + jnp.dot(tap, w_ref[t],
                                preferred_element_type=jnp.float32)
        o_ref[...] = (jnp.maximum(acc, 0.0)
                      .reshape(tho, Wop, tn).astype(o_ref.dtype))

    grid_spec = pltpu.PrefetchScalarGridSpec(
        num_scalar_prefetch=0,
        # Cout-tile axis OUTERMOST: each weight tile is fetched once and
        # reused across all batches / row tiles.
        grid=(n_n, B, n_h),
        in_specs=[
            # (tho+1)-row halo'd input window, all parities packed in the lane dim
            pl.BlockSpec((None, None, thp1, Wd, K4),
                         lambda n, b, i: (b, i, 0, 0, 0)),
            # packed conv weight, tiled over Cout only
            pl.BlockSpec((4, K4, tn), lambda n, b, i: (0, 0, n)),
            # bias row
            pl.BlockSpec((1, tn), lambda n, b, i: (0, n)),
        ],
        out_specs=pl.BlockSpec((None, tho, Wop, tn),
                               lambda n, b, i: (b, i, 0, n)),
    )
    return pl.pallas_call(
        kernel,
        out_shape=jax.ShapeDtypeStruct((B, Ho_pad, Wop, Npad), out_dtype),
        grid_spec=grid_spec,
        compiler_params=pltpu.CompilerParams(
            dimension_semantics=("parallel", "parallel", "parallel"),
            vmem_limit_bytes=int(vmem_limit),
        ),
    )(xst, w4, brow)


# ---------------------------------------------------------------------------
# Public wrappers
# ---------------------------------------------------------------------------
def down_block_forward_nhwc(x_nhwc, weight, bias, *, compute_dtype=None,
                            out_dtype=None, row_tile_target=None,
                            cout_tile=None):
    """relu(conv2d(x, W, b, kernel=4, stride=2, pad=1)); NHWC in, NHWC out."""
    B, H, W, Cin = x_nhwc.shape
    Cout = weight.shape[0]
    Ho, Wo = (H - 2) // 2 + 1, (W - 2) // 2 + 1          # == H//2, W//2 for even H,W

    in_dt = jnp.dtype(compute_dtype) if compute_dtype is not None else jnp.dtype(x_nhwc.dtype)
    out_dt = jnp.dtype(out_dtype) if out_dtype is not None else jnp.dtype(x_nhwc.dtype)

    budget = _vmem_budget_bytes()
    if row_tile_target is None:
        row_tile_target = 1024 if budget >= 80 * 1024 * 1024 else 512
    if cout_tile is None:
        cout_tile = _default_cout_tile()

    K4, Wop, Wd, tho, Ho_pad, Npad, tn = _plan(
        Ho, Wo, Cin, Cout, in_dt, out_dt, row_tile_target, cout_tile, budget)

    xs = _space_to_depth(x_nhwc, Ho_pad, Wd, in_dt)
    xst = _tile_rows_with_halo(xs, tho)
    w4, brow = _prep_weight_bias(weight, bias, Npad, in_dt)

    out = _conv_relu_pallas(xst, w4, brow, tho=tho, Wop=Wop, tn=tn,
                            out_dtype=out_dt, vmem_limit=budget)
    return out[:, :Ho, :Wo, :Cout]


def down_block_forward(x_nchw, weight, bias, **kwargs):
    """PyTorch-parity API: NCHW in, NCHW out (DownBlock default forward)."""
    x_nhwc = jnp.transpose(x_nchw, (0, 2, 3, 1))
    y = down_block_forward_nhwc(x_nhwc, weight, bias, **kwargs)
    return jnp.transpose(y, (0, 3, 1, 2))


# ---------------------------------------------------------------------------
# Reference (plain JAX) for correctness checking
# ---------------------------------------------------------------------------
def _reference(x_nchw, weight, bias):
    out = jax.lax.conv_general_dilated(
        x_nchw, weight,
        window_strides=(2, 2), padding=((1, 1), (1, 1)),
        dimension_numbers=("NCHW", "OIHW", "NCHW"))
    out = out + bias.reshape(1, -1, 1, 1)
    return jnp.maximum(out, 0.0)


if __name__ == "__main__":
    key = jax.random.PRNGKey(0)
    kx, kw, kb = jax.random.split(key, 3)

    # --- main check (module-sized shapes) ---------------------------------
    B, Cin, H, W = 2, 4, 16, 16
    Cout = 8
    x = jax.random.normal(kx, (B, Cin, H, W), dtype=jnp.float32)
    weight = jax.random.normal(kw, (Cout, Cin, 4, 4), dtype=jnp.float32) * 0.1
    bias = jax.random.normal(kb, (Cout,), dtype=jnp.float32) * 0.1

    fwd = jax.jit(down_block_forward)
    out = jax.block_until_ready(fwd(x, weight, bias))

    ref = _reference(x, weight, bias)
    assert out.shape == (B, Cout, H // 2, W // 2), out.shape
    assert jnp.allclose(out, ref, atol=1e-4, rtol=1e-4), \
        float(jnp.max(jnp.abs(out - ref)))

    # --- secondary check: exercises row-halo tiling (n_h>1) and Cout tiling
    #     (n_n>1) with the weight-outermost grid ---------------------------
    k2 = jax.random.split(key, 6)
    x2 = jax.random.normal(k2[3], (2, 8, 32, 32), dtype=jnp.float32)
    w2 = jax.random.normal(k2[4], (160, 8, 4, 4), dtype=jnp.float32) * 0.1
    b2 = jax.random.normal(k2[5], (160,), dtype=jnp.float32) * 0.1
    out2 = jax.block_until_ready(
        down_block_forward(x2, w2, b2, row_tile_target=64, cout_tile=128))
    ref2 = _reference(x2, w2, b2)
    assert out2.shape == (2, 160, 16, 16), out2.shape
    assert jnp.allclose(out2, ref2, atol=5e-3, rtol=5e-3), \
        float(jnp.max(jnp.abs(out2 - ref2)))

    print("KERNEL_OK")
</pallas_src>

<mosaic_0001>
module attributes {stable_mosaic.version = 11 : i64} {
  func.func @kernel(%arg0: i32, %arg1: i32, %arg2: i32, %arg3: memref<1x1x9x16x16xf32, #tpu.memory_space<vmem>>, %arg4: memref<4x16x128xf32, #tpu.memory_space<vmem>>, %arg5: memref<1x128xf32, #tpu.memory_space<vmem>>, %arg6: memref<1x8x8x128xf32, #tpu.memory_space<vmem>>) attributes {dimension_semantics = [#tpu.dimension_semantics<parallel>, #tpu.dimension_semantics<parallel>, #tpu.dimension_semantics<parallel>], iteration_bounds = array<i64: 1, 2, 1>, scalar_prefetch = 0 : i64, scratch_operands = 0 : i64, tpu.core_type = #tpu.core_type<tc>, window_params = [{transform_indices = @transform_0, window_bounds = array<i64: 1, 1, 9, 16, 16>}, {transform_indices = @transform_1, window_bounds = array<i64: 4, 16, 128>}, {transform_indices = @transform_2, window_bounds = array<i64: 1, 128>}, {transform_indices = @transform_3, window_bounds = array<i64: 1, 8, 8, 128>}]} {
    %c0 = arith.constant 0 : index
    %c0_0 = arith.constant 0 : index
    %0 = vector.load %arg5[%c0, %c0_0] : memref<1x128xf32, #tpu.memory_space<vmem>>, vector<1x128xf32>
    %c0_1 = arith.constant 0 : index
    %c0_2 = arith.constant 0 : index
    %c0_3 = arith.constant 0 : index
    %c0_4 = arith.constant 0 : index
    %c0_5 = arith.constant 0 : index
    %1 = vector.load %arg3[%c0_1, %c0_2, %c0_3, %c0_4, %c0_5] : memref<1x1x9x16x16xf32, #tpu.memory_space<vmem>>, vector<1x1x8x8x16xf32>
    %2 = vector.shape_cast %1 : vector<1x1x8x8x16xf32> to vector<8x8x16xf32>
    %3 = vector.shape_cast %2 : vector<8x8x16xf32> to vector<64x16xf32>
    %c0_6 = arith.constant 0 : index
    %c0_7 = arith.constant 0 : index
    %c0_8 = arith.constant 0 : index
    %4 = vector.load %arg4[%c0_6, %c0_7, %c0_8] : memref<4x16x128xf32, #tpu.memory_space<vmem>>, vector<1x16x128xf32>
    %5 = vector.shape_cast %4 : vector<1x16x128xf32> to vector<16x128xf32>
    %cst = arith.constant dense<0.000000e+00> : vector<64x128xf32>
    %6 = tpu.matmul %3, %5, %cst {dimension_numbers = #tpu.dot_dimension_numbers<[1], [0], [0], [1], [0, 0, 1, 1], [], []>} : vector<64x16xf32>, vector<16x128xf32>, vector<64x128xf32> -> vector<64x128xf32>
    %7 = vector.broadcast %0 : vector<1x128xf32> to vector<64x128xf32>
    %8 = arith.addf %7, %6 : vector<64x128xf32>
    %c0_9 = arith.constant 0 : index
    %c0_10 = arith.constant 0 : index
    %c0_11 = arith.constant 0 : index
    %c1 = arith.constant 1 : index
    %c0_12 = arith.constant 0 : index
    %9 = vector.load %arg3[%c0_9, %c0_10, %c0_11, %c1, %c0_12] : memref<1x1x9x16x16xf32, #tpu.memory_space<vmem>>, vector<1x1x8x8x16xf32>
    %10 = vector.shape_cast %9 : vector<1x1x8x8x16xf32> to vector<8x8x16xf32>
    %11 = vector.shape_cast %10 : vector<8x8x16xf32> to vector<64x16xf32>
    %c1_13 = arith.constant 1 : index
    %c0_14 = arith.constant 0 : index
    %c0_15 = arith.constant 0 : index
    %12 = vector.load %arg4[%c1_13, %c0_14, %c0_15] : memref<4x16x128xf32, #tpu.memory_space<vmem>>, vector<1x16x128xf32>
    %13 = vector.shape_cast %12 : vector<1x16x128xf32> to vector<16x128xf32>
    %cst_16 = arith.constant dense<0.000000e+00> : vector<64x128xf32>
    %14 = tpu.matmul %11, %13, %cst_16 {dimension_numbers = #tpu.dot_dimension_numbers<[1], [0], [0], [1], [0, 0, 1, 1], [], []>} : vector<64x16xf32>, vector<16x128xf32>, vector<64x128xf32> -> vector<64x128xf32>
    %15 = arith.addf %8, %14 : vector<64x128xf32>
    %c0_17 = arith.constant 0 : index
    %c0_18 = arith.constant 0 : index
    %c1_19 = arith.constant 1 : index
    %c0_20 = arith.constant 0 : index
    %c0_21 = arith.constant 0 : index
    %16 = vector.load %arg3[%c0_17, %c0_18, %c1_19, %c0_20, %c0_21] : memref<1x1x9x16x16xf32, #tpu.memory_space<vmem>>, vector<1x1x8x8x16xf32>
    %17 = vector.shape_cast %16 : vector<1x1x8x8x16xf32> to vector<8x8x16xf32>
    %18 = vector.shape_cast %17 : vector<8x8x16xf32> to vector<64x16xf32>
    %c2 = arith.constant 2 : index
    %c0_22 = arith.constant 0 : index
    %c0_23 = arith.constant 0 : index
    %19 = vector.load %arg4[%c2, %c0_22, %c0_23] : memref<4x16x128xf32, #tpu.memory_space<vmem>>, vector<1x16x128xf32>
    %20 = vector.shape_cast %19 : vector<1x16x128xf32> to vector<16x128xf32>
    %cst_24 = arith.constant dense<0.000000e+00> : vector<64x128xf32>
    %21 = tpu.matmul %18, %20, %cst_24 {dimension_numbers = #tpu.dot_dimension_numbers<[1], [0], [0], [1], [0, 0, 1, 1], [], []>} : vector<64x16xf32>, vector<16x128xf32>, vector<64x128xf32> -> vector<64x128xf32>
    %22 = arith.addf %15, %21 : vector<64x128xf32>
    %c0_25 = arith.constant 0 : index
    %c0_26 = arith.constant 0 : index
    %c1_27 = arith.constant 1 : index
    %c1_28 = arith.constant 1 : index
    %c0_29 = arith.constant 0 : index
    %23 = vector.load %arg3[%c0_25, %c0_26, %c1_27, %c1_28, %c0_29] : memref<1x1x9x16x16xf32, #tpu.memory_space<vmem>>, vector<1x1x8x8x16xf32>
    %24 = vector.shape_cast %23 : vector<1x1x8x8x16xf32> to vector<8x8x16xf32>
    %25 = vector.shape_cast %24 : vector<8x8x16xf32> to vector<64x16xf32>
    %c3 = arith.constant 3 : index
    %c0_30 = arith.constant 0 : index
    %c0_31 = arith.constant 0 : index
    %26 = vector.load %arg4[%c3, %c0_30, %c0_31] : memref<4x16x128xf32, #tpu.memory_space<vmem>>, vector<1x16x128xf32>
    %27 = vector.shape_cast %26 : vector<1x16x128xf32> to vector<16x128xf32>
    %cst_32 = arith.constant dense<0.000000e+00> : vector<64x128xf32>
    %28 = tpu.matmul %25, %27, %cst_32 {dimension_numbers = #tpu.dot_dimension_numbers<[1], [0], [0], [1], [0, 0, 1, 1], [], []>} : vector<64x16xf32>, vector<16x128xf32>, vector<64x128xf32> -> vector<64x128xf32>
    %29 = arith.addf %22, %28 : vector<64x128xf32>
    %cst_33 = arith.constant 0.000000e+00 : f32
    %30 = vector.broadcast %cst_33 : f32 to vector<64x128xf32>
    %31 = arith.maximumf %29, %30 : vector<64x128xf32>
    %32 = vector.shape_cast %31 : vector<64x128xf32> to vector<8x8x128xf32>
    %c0_34 = arith.constant 0 : index
    %c0_35 = arith.constant 0 : index
    %c0_36 = arith.constant 0 : index
    %c0_37 = arith.constant 0 : index
    %33 = vector.load %arg6[%c0_34, %c0_35, %c0_36, %c0_37] : memref<1x8x8x128xf32, #tpu.memory_space<vmem>>, vector<1x8x8x128xf32>
    %34 = vector.shape_cast %33 : vector<1x8x8x128xf32> to vector<8x8x128xf32>
    %35 = vector.shape_cast %32 : vector<8x8x128xf32> to vector<1x8x8x128xf32>
    tpu.vector_store %arg6[%c0_34, %c0_35, %c0_36, %c0_37], %35 {strides = array<i32>} : memref<1x8x8x128xf32, #tpu.memory_space<vmem>>, vector<1x8x8x128xf32>,
    return
  }
  func.func @transform_0(%arg0: i32, %arg1: i32, %arg2: i32) -> (i32, i32, i32, i32, i32) {
    %c0_i32 = arith.constant 0 : i32
    %c0_i32_0 = arith.constant 0 : i32
    %c0_i32_1 = arith.constant 0 : i32
    %c0_i32_2 = arith.constant 0 : i32
    return %arg1, %arg2, %c0_i32, %c0_i32_0, %c0_i32_1 : i32, i32, i32, i32, i32
  }
  func.func @transform_1(%arg0: i32, %arg1: i32, %arg2: i32) -> (i32, i32, i32) {
    %c0_i32 = arith.constant 0 : i32
    %c0_i32_0 = arith.constant 0 : i32
    %c0_i32_1 = arith.constant 0 : i32
    return %c0_i32, %c0_i32_0, %arg0 : i32, i32, i32
  }
  func.func @transform_2(%arg0: i32, %arg1: i32, %arg2: i32) -> (i32, i32) {
    %c0_i32 = arith.constant 0 : i32
    %c0_i32_0 = arith.constant 0 : i32
    return %c0_i32, %arg0 : i32, i32
  }
  func.func @transform_3(%arg0: i32, %arg1: i32, %arg2: i32) -> (i32, i32, i32, i32) {
    %c0_i32 = arith.constant 0 : i32
    %c0_i32_0 = arith.constant 0 : i32
    return %arg1, %arg2, %c0_i32, %arg0 : i32, i32, i32, i32
  }
}

</mosaic_0001>

<llo_original>
// kernel: down_block_forward.1
$region0: #{down_block_forward.1}
  #allocation0 [shape = 'u32[]', space=smem, size = 0x4, offset = 0x4, fixed_abs, tag = 'smem constant byte address 0x4 - core index']
  #allocation1 [shape = 'u32[144,128]{1,0:T(1,128)}', space=vmem, size = 0x12000, scoped, tag = 'internal scratch']
  %s0 = inlined_call_operand.vmem [shape: f32[2,1,9,16,16], index: 0, kind: input, shape index: {}]
  %s1 = inlined_call_operand.vmem [shape: f32[4,16,128], index: 1, kind: input, shape index: {}]
  %s2 = inlined_call_operand.vmem [shape: f32[1,128], index: 2, kind: input, shape index: {}]
  %s3 = inlined_call_operand.vmem [shape: f32[2,8,8,128], index: 3, kind: output, shape index: {}]
  %s4 = sld [smem:[#allocation0]]
  $region45: #{down_block_forward.1} parent=0
    _
  %s6 = ssub.s32 1, %s4
  %s7 = scalar_select 0, %s6, %s4
  loop: start=0, step=1, limit=4
  $region2: #{down_block_forward.1} parent=0 // loop_pre_header
    _
  $region3: #{down_block_forward.1} parent=0 // loop_header
    %s9 = sphi 0, %s13
    %p10 = scmp.ge.s32.totalorder %s9, 4
    %s16 = sphi 0, %s35
    %s17 = sphi 0, %s31
    %s18 = sphi 0, %s27
    %s19 = sphi 0, %s16
    %s20 = sphi 0, %s17
    %s21 = sphi 0, %s18
    %s22 = sphi 0, %s19
    %s23 = sphi 0, %s20
    %s24 = sphi 0, %s21
    %s40 = sphi 0, %s42
    %s43 = sphi 0, %s40
    %s44 = sphi 0, %s43
    %s60 = sphi 0, %s44
    %s66 = sphi 0, %s68
    %s69 = sphi 0, %s66
    %s70 = sphi 0, %s69
    %s86 = sphi 0, %s70
    %s92 = sphi 0, %s94
    %s95 = sphi 0, %s92
    %s96 = sphi 0, %s95
    %s112 = sphi 0, %s96
    %s122 = sphi 0, %s124
    %s125 = sphi 0, %s122
    %s126 = sphi 0, %s125
    %s142 = sphi 0, %s126
  $region4: #{down_block_forward.1} parent=0 // loop_header_branch
    %12 = sbr.rel (%p10) target = $region8
  $region5: #{down_block_forward.1} parent=0 // loop_body
    %s14 = ssub.s32 %s9, 1
    %s15 = ssub.s32 %s9, 2
    %s25 = sadd.s32 1, %s18
    %p26 = scmp.ge.s32.totalorder %s25, 1
    %s27 = scalar_select %p26, 0, %s25
    %s28 = sadd.s32 1, %s17
    %s29 = scalar_select %p26, %s28, %s17
    %p30 = scmp.ge.s32.totalorder %s29, 2
    %s31 = scalar_select %p30, 0, %s29
    %s32 = sadd.s32 1, %s16
    %s33 = scalar_select %p30, %s32, %s16
    %p34 = scmp.ge.s32.totalorder %s33, 1
    %s35 = scalar_select %p34, 0, %s33
    %s36 = ssub.s32 %s17, %s31
    %s37 = ssub.s32 %s18, %s27
    %s38 = sor.u32 %s36, %s37
    %p39 = scmp.eq.s32.totalorder %s38, 0
    %s41 = sadd.s32 %s40, 1
    %s42 = scalar_select %p39, %s40, %s41
    %p45 = pneg %p39
    %p46 = scmp.eq.s32.totalorder %s9, 1
    %p47 = por %p45, %p46
    %p48 = scmp.ne.s32.totalorder %s40, %s43
    %p49 = scmp.eq.s32.totalorder %s9, 0
    %p50 = por %p48, %p49
    %p51 = scmp.ne.s32.totalorder %s40, %s43
    %p52 = scmp.eq.s32.totalorder %s14, 1
    %p53 = por %p51, %p52
    %p54 = scmp.ne.s32.totalorder %s43, %s44
    %p55 = scmp.eq.s32.totalorder %s14, 0
    %p56 = por %p54, %p55
    %p57 = scmp.ne.s32.totalorder %s43, %s44
    %p58 = scmp.eq.s32.totalorder %s15, 1
    %p59 = por %p57, %p58
    %p61 = scmp.ne.s32.totalorder %s44, %s60
    %p62 = scmp.eq.s32.totalorder %s15, 0
    %p63 = por %p61, %p62
    %s64 = ssub.s32 %s16, %s35
    %p65 = scmp.eq.s32.totalorder %s64, 0
    %s67 = sadd.s32 %s66, 1
    %s68 = scalar_select %p65, %s66, %s67
    %p71 = pneg %p65
    %p72 = scmp.eq.s32.totalorder %s9, 1
    %p73 = por %p71, %p72
    %p74 = scmp.ne.s32.totalorder %s66, %s69
    %p75 = scmp.eq.s32.totalorder %s9, 0
    %p76 = por %p74, %p75
    %p77 = scmp.ne.s32.totalorder %s66, %s69
    %p78 = scmp.eq.s32.totalorder %s14, 1
    %p79 = por %p77, %p78
    %p80 = scmp.ne.s32.totalorder %s69, %s70
    %p81 = scmp.eq.s32.totalorder %s14, 0
    %p82 = por %p80, %p81
    %p83 = scmp.ne.s32.totalorder %s69, %s70
    %p84 = scmp.eq.s32.totalorder %s15, 1
    %p85 = por %p83, %p84
    %p87 = scmp.ne.s32.totalorder %s70, %s86
    %p88 = scmp.eq.s32.totalorder %s15, 0
    %p89 = por %p87, %p88
    %s90 = ssub.s32 %s16, %s35
    %p91 = scmp.eq.s32.totalorder %s90, 0
    %s93 = sadd.s32 %s92, 1
    %s94 = scalar_select %p91, %s92, %s93
    %p97 = pneg %p91
    %p98 = scmp.eq.s32.totalorder %s9, 1
    %p99 = por %p97, %p98
    %p100 = scmp.ne.s32.totalorder %s92, %s95
    %p101 = scmp.eq.s32.totalorder %s9, 0
    %p102 = por %p100, %p101
    %p103 = scmp.ne.s32.totalorder %s92, %s95
    %p104 = scmp.eq.s32.totalorder %s14, 1
    %p105 = por %p103, %p104
    %p106 = scmp.ne.s32.totalorder %s95, %s96
    %p107 = scmp.eq.s32.totalorder %s14, 0
    %p108 = por %p106, %p107
    %p109 = scmp.ne.s32.totalorder %s95, %s96
    %p110 = scmp.eq.s32.totalorder %s15, 1
    %p111 = por %p109, %p110
    %p113 = scmp.ne.s32.totalorder %s96, %s112
    %p114 = scmp.eq.s32.totalorder %s15, 0
    %p115 = por %p113, %p114
    %s116 = ssub.s32 %s17, %s31
    %s117 = ssub.s32 %s18, %s27
    %s118 = sor.u32 %s116, %s117
    %s119 = ssub.s32 %s16, %s35
    %s120 = sor.u32 %s118, %s119
    %p121 = scmp.eq.s32.totalorder %s120, 0
    %s123 = sadd.s32 %s122, 1
    %s124 = scalar_select %p121, %s122, %s123
    %p127 = pneg %p121
    %p128 = scmp.eq.s32.totalorder %s9, 1
    %p129 = por %p127, %p128
    %p130 = scmp.ne.s32.totalorder %s122, %s125
    %p131 = scmp.eq.s32.totalorder %s9, 0
    %p132 = por %p130, %p131
    %p133 = scmp.ne.s32.totalorder %s122, %s125
    %p134 = scmp.eq.s32.totalorder %s14, 1
    %p135 = por %p133, %p134
    %p136 = scmp.ne.s32.totalorder %s125, %s126
    %p137 = scmp.eq.s32.totalorder %s14, 0
    %p138 = por %p136, %p137
    %p139 = scmp.ne.s32.totalorder %s125, %s126
    %p140 = scmp.eq.s32.totalorder %s15, 1
    %p141 = por %p139, %p140
    %p143 = scmp.ne.s32.totalorder %s126, %s142
    %p144 = scmp.eq.s32.totalorder %s15, 0
    %p145 = por %p143, %p144
    %p146 = scmp.le.s32.totalorder 1, %s9
    %p147 = scmp.lt.s32.totalorder %s9, 3
    %p148 = pnand %p146, %p147
    %p149 = pneg %p148
    // Predicated region
    $region9: #{down_block_forward.1} parent=5 // pred_check
      _
    $region10: #{down_block_forward.1} parent=5 // pred_check_branch
      %151 = sbr.rel (%p148) target = $region12
    $region11: #{down_block_forward.1} parent=5 // pred_region
      %s152 = ssub.s32 %s9, 1
      // Predicated region
      $region13: #{down_block_forward.1} parent=11 // pred_check
        %p153 = pneg %p82
      $region14: #{down_block_forward.1} parent=11 // pred_check_branch
        %155 = sbr.rel (%p153) target = $region16
      $region15: #{down_block_forward.1} parent=11 // pred_region
        %p156 = scmp.lt.s32.totalorder %s19, 0
        %s157 = scalar_select %p156, %s19, 0
        %s158 = smul.addr %s157, 8
        %s159 = scalar_lea.vmem %s1, %s158
      $region16: #{down_block_forward.1} parent=11 // pred_fallthru
        _
      // Predicated region
      $region17: #{down_block_forward.1} parent=11 // pred_check
        %p160 = pneg %p108
      $region18: #{down_block_forward.1} parent=11 // pred_check_branch
        %162 = sbr.rel (%p160) target = $region20
      $region19: #{down_block_forward.1} parent=11 // pred_region
        %p163 = scmp.lt.s32.totalorder %s19, 0
        %s164 = scalar_select %p163, %s19, 0
        %s165 = scalar_lea.vmem %s2, %s164
      $region20: #{down_block_forward.1} parent=11 // pred_fallthru
        _
    $region12: #{down_block_forward.1} parent=5 // pred_fallthru
      _
    %p166 = scmp.lt.s32.totalorder %s9, 2
    // Predicated region
    $region21: #{down_block_forward.1} parent=5 // pred_check
      %p167 = pneg %p166
    $region22: #{down_block_forward.1} parent=5 // pred_check_branch
      %169 = sbr.rel (%p167) target = $region24
    $region23: #{down_block_forward.1} parent=5 // pred_region
      // Predicated region
      $region25: #{down_block_forward.1} parent=23 // pred_check
        %p170 = pneg %p50
      $region26: #{down_block_forward.1} parent=23 // pred_check_branch
        %172 = sbr.rel (%p170) target = $region28
      $region27: #{down_block_forward.1} parent=23 // pred_region
        %p173 = scmp.lt.s32.totalorder %s17, 1
        %s174 = scalar_select %p173, %s17, 1
        %p175 = scmp.lt.s32.totalorder %s18, 0
        %s176 = scalar_select %p175, %s18, 0
        %s177 = smul.addr %s176, 18
        %s178 = smul.addr %s174, 18
        %s179 = sadd.s32 %s177, %s178
        %s180 = smul.addr %s179, 8
        %s181 = scalar_lea.vmem %s0, %s180
      $region28: #{down_block_forward.1} parent=23 // pred_fallthru
        _
    $region24: #{down_block_forward.1} parent=5 // pred_fallthru
      _
    %p182 = scmp.le.s32.totalorder 1, %s9
    %p183 = scmp.lt.s32.totalorder %s9, 3
    %p184 = pnand %p182, %p183
    %p185 = pneg %p184
    // Predicated region
    $region29: #{down_block_forward.1} parent=5 // pred_check
      _
    $region30: #{down_block_forward.1} parent=5 // pred_check_branch
      %187 = sbr.rel (%p184) target = $region32
    $region31: #{down_block_forward.1} parent=5 // pred_region
      %s188 = ssub.s32 %s9, 1
      %p189 = scmp.lt.s32.totalorder %s20, 1
      %s190 = scalar_select %p189, %s20, 1
      %p191 = scmp.lt.s32.totalorder %s21, 0
      %s192 = scalar_select %p191, %s21, 0
      %s193 = smul.addr %s192, 18
      %s194 = smul.addr %s190, 18
      %s195 = sadd.s32 %s193, %s194
      %s196 = smul.addr %s195, 8
      %s197 = scalar_lea.vmem %s0, %s196
      %p198 = pneg %p56
      %p199 = pneg %p53
      %p200 = scmp.lt.s32.totalorder %s19, 0
      %s201 = scalar_select %p200, %s19, 0
      %s202 = smul.addr %s201, 8
      %s203 = scalar_lea.vmem %s1, %s202
      %p204 = pneg %p82
      %p205 = pneg %p79
      %p206 = scmp.lt.s32.totalorder %s19, 0
      %s207 = scalar_select %p206, %s19, 0
      %s208 = scalar_lea.vmem %s2, %s207
      %p209 = pneg %p108
      %p210 = pneg %p105
      %p211 = pneg %p138
      %p212 = pneg %p135
      %s213 = smul.u32 8, %s21
      %p214 = scmp.lt.s32.totalorder %s20, 1
      %s215 = scalar_select %p214, %s20, 1
      %p216 = scmp.lt.s32.totalorder %s213, 7
      %s217 = scalar_select %p216, %s213, 7
      %p218 = scmp.lt.s32.totalorder %s19, 0
      %s219 = scalar_select %p218, %s19, 0
      %s220 = sadd.s32 %s219, %s217
      %s221 = smul.addr %s215, 8
      %s222 = sadd.s32 %s220, %s221
      %s223 = smul.addr %s222, 8
      %s224 = scalar_lea.vmem %s3, %s223
      %p225 = scmp.lt.s32.totalorder %s20, 1
      %s226 = scalar_select %p225, %s20, 1
      %p227 = scmp.lt.s32.totalorder %s21, 0
      %s228 = scalar_select %p227, %s21, 0
      %s229 = smul.addr %s228, 18
      %s230 = smul.addr %s226, 18
      %s231 = sadd.s32 %s229, %s230
      %s232 = smul.addr %s231, 8
      %s233 = scalar_lea.vmem %s0, %s232
      %p234 = scmp.lt.s32.totalorder %s19, 0
      %s235 = scalar_select %p234, %s19, 0
      %s236 = smul.addr %s235, 8
      %s237 = scalar_lea.vmem %s1, %s236
      %p238 = scmp.lt.s32.totalorder %s19, 0
      %s239 = scalar_select %p238, %s19, 0
      %s240 = scalar_lea.vmem %s2, %s239
      %s241 = smul.u32 8, %s21
      %p242 = scmp.lt.s32.totalorder %s20, 1
      %s243 = scalar_select %p242, %s20, 1
      %p244 = scmp.lt.s32.totalorder %s241, 7
      %s245 = scalar_select %p244, %s241, 7
      %p246 = scmp.lt.s32.totalorder %s19, 0
      %s247 = scalar_select %p246, %s19, 0
      %s248 = sadd.s32 %s247, %s245
      %s249 = smul.addr %s243, 8
      %s250 = sadd.s32 %s248, %s249
      %s251 = smul.addr %s250, 8
      %s252 = scalar_lea.vmem %s3, %s251
      %s253 = smul.u32 8, %s21
      %v254 = vld [vmem:[%s240] sm:$0x1]
      %v255 = vld [vmem:[%s233] sm:$0xff]
      %v256 = vld [vmem:[%s233 + $0x10] sm:$0xff]
      %v257 = vld [vmem:[%s233 + $0x20] sm:$0xff]
      %v258 = vld [vmem:[%s233 + $0x30] sm:$0xff]
      %v259 = vld [vmem:[%s233 + $0x40] sm:$0xff]
      %v260 = vld [vmem:[%s233 + $0x50] sm:$0xff]
      %v261 = vld [vmem:[%s233 + $0x60] sm:$0xff]
      %v262 = vld [vmem:[%s233 + $0x70] sm:$0xff]
      %v263 = vld [vmem:[%s237] sm:$0xff]
      %v264 = vld [vmem:[%s237 + $0x8] sm:$0xff]
      %vm265 = vcmask 130048
      %v267 = vsel %vm265, %v255, 0
      %v270 = vsel %vm265, %v256, 0
      %v273 = vsel %vm265, %v257, 0
      %v276 = vsel %vm265, %v258, 0
      %v279 = vsel %vm265, %v259, 0
      %v282 = vsel %vm265, %v260, 0
      %v285 = vsel %vm265, %v261, 0
      %v288 = vsel %vm265, %v262, 0
      %290 = vmatprep.subr.mxu0 0.0
      %291 = vmatpush1.msra.mxu0 0.0
      %292 = vmatprep.subr.mxu0 0.0
      %293 = vmatpush1.msra.mxu0 0.0
      %294 = vmatprep.subr.mxu0 0.0
      %295 = vmatpush1.msra.mxu0 0.0
      %296 = vmatprep.subr.mxu0 0.0
      %297 = vmatpush1.msra.mxu0 0.0
      %298 = vmatprep.subr.mxu0 0.0
      %299 = vmatpush1.msra.mxu0 0.0
      %300 = vmatprep.subr.mxu0 0.0
      %301 = vmatpush1.msra.mxu0 0.0
      %302 = vmatprep.subr.mxu0 0.0
      %303 = vmatpush1.msra.mxu0 0.0
      %304 = vmatprep.subr.mxu0 0.0
      %305 = vmatpush1.msra.mxu0 0.0
      %306 = vmatprep.subr.mxu0 0.0
      %307 = vmatpush1.msra.mxu0 0.0
      %308 = vmatprep.subr.mxu0 0.0
      %309 = vmatpush1.msra.mxu0 0.0
      %310 = vmatprep.subr.mxu0 0.0
      %311 = vmatpush1.msra.mxu0 0.0
      %312 = vmatprep.subr.mxu0 0.0
      %313 = vmatpush1.msra.mxu0 0.0
      %314 = vmatprep.subr.mxu0 0.0
      %315 = vmatpush1.msra.mxu0 0.0
      %316 = vmatprep.subr.mxu0 0.0
      %317 = vmatpush1.msra.mxu0 0.0
      %318 = vmatprep.subr.mxu0 0.0
      %319 = vmatpush1.msra.mxu0 %v264
      %320 = vmatprep.subr.mxu0 0.0
      %321 = vmatpush1.msra.mxu0 %v263
      %322 = vmatprep.subr.mxu0 0.0
      %323 = vmatpush2.msra.mxu0 0.0
      %324 = vmatprep.subr.mxu0 0.0
      %325 = vmatpush2.msra.mxu0 0.0
      %326 = vmatprep.subr.mxu0 0.0
      %327 = vmatpush2.msra.mxu0 0.0
      %328 = vmatprep.subr.mxu0 0.0
      %329 = vmatpush2.msra.mxu0 0.0
      %330 = vmatprep.subr.mxu0 0.0
      %331 = vmatpush2.msra.mxu0 0.0
      %332 = vmatprep.subr.mxu0 0.0
      %333 = vmatpush2.msra.mxu0 0.0
      %334 = vmatprep.subr.mxu0 0.0
      %335 = vmatpush2.msra.mxu0 0.0
      %336 = vmatprep.subr.mxu0 0.0
      %337 = vmatpush2.msra.mxu0 0.0
      %338 = vmatprep.subr.mxu0 0.0
      %339 = vmatpush2.msra.mxu0 0.0
      %340 = vmatprep.subr.mxu0 0.0
      %341 = vmatpush2.msra.mxu0 0.0
      %342 = vmatprep.subr.mxu0 0.0
      %343 = vmatpush2.msra.mxu0 0.0
      %344 = vmatprep.subr.mxu0 0.0
      %345 = vmatpush2.msra.mxu0 0.0
      %346 = vmatprep.subr.mxu0 0.0
      %347 = vmatpush2.msra.mxu0 0.0
      %348 = vmatprep.subr.mxu0 0.0
      %349 = vmatpush2.msra.mxu0 0.0
      %350 = vmatprep.subr.mxu0 0.0
      %351 = vmatpush2.msra.mxu0 0.0
      %352 = vmatprep.subr.mxu0 0.0
      %353 = vmatpush2.msra.mxu0 0.0
      %354 = vmatprep.mubr.f32.mxu0 0.0
      %355 = vmatmul.mubr.f32.gmra.mxu0 %v267
      %v356 = vpop.f32.mrf.mxu0
      %v357 = vadd.f32 0.0, %v356
      %v358 = vpop.f32.mrf.mxu0
      %359 = vmatprep.mubr.f32.mxu0 0.0
      %360 = vmatmul.mubr.f32.gmra.mxu0 %v270
      %v361 = vpop.f32.mrf.mxu0
      %v362 = vadd.f32 0.0, %v361
      %v363 = vpop.f32.mrf.mxu0
      %364 = vmatprep.mubr.f32.mxu0 0.0
      %365 = vmatmul.mubr.f32.gmra.mxu0 %v273
      %v366 = vpop.f32.mrf.mxu0
      %v367 = vadd.f32 0.0, %v366
      %v368 = vpop.f32.mrf.mxu0
      %369 = vmatprep.mubr.f32.mxu0 0.0
      %370 = vmatmul.mubr.f32.gmra.mxu0 %v276
      %v371 = vpop.f32.mrf.mxu0
      %v372 = vadd.f32 0.0, %v371
      %v373 = vpop.f32.mrf.mxu0
      %374 = vmatprep.mubr.f32.mxu0 0.0
      %375 = vmatmul.mubr.f32.gmra.mxu0 %v279
      %v376 = vpop.f32.mrf.mxu0
      %v377 = vadd.f32 0.0, %v376
      %v378 = vpop.f32.mrf.mxu0
      %379 = vmatprep.mubr.f32.mxu0 0.0
      %380 = vmatmul.mubr.f32.gmra.mxu0 %v282
      %v381 = vpop.f32.mrf.mxu0
      %v382 = vadd.f32 0.0, %v381
      %v383 = vpop.f32.mrf.mxu0
      %384 = vmatprep.mubr.f32.mxu0 0.0
      %385 = vmatmul.mubr.f32.gmra.mxu0 %v285
      %v386 = vpop.f32.mrf.mxu0
      %v387 = vadd.f32 0.0, %v386
      %v388 = vpop.f32.mrf.mxu0
      %389 = vmatprep.mubr.f32.mxu0 0.0
      %390 = vmatmul.mubr.f32.gmra.mxu0 %v288
      %v391 = vpop.f32.mrf.mxu0
      %v392 = vadd.f32 0.0, %v391
      %v393 = vpop.f32.mrf.mxu0
      %394 = vdwg.mxu0
      %v396 = vlaneseq
      %v397 = vshrl.u32 %v396, 7
      %v398 = vsub.s32 0, %v397
      %v399 = vrot.slane %v254, %v398
      %v401 = vadd.f32 %v399, %v357
      %v402 = vadd.f32 %v399, %v362
      %v403 = vadd.f32 %v399, %v367
      %v404 = vadd.f32 %v399, %v372
      %v405 = vadd.f32 %v399, %v377
      %v406 = vadd.f32 %v399, %v382
      %v407 = vadd.f32 %v399, %v387
      %v408 = vadd.f32 %v399, %v392
      %v409 = vld [vmem:[%s233 + $0x1] sm:$0xff]
      %v410 = vld [vmem:[%s233 + $0x11] sm:$0xff]
      %v411 = vld [vmem:[%s233 + $0x21] sm:$0xff]
      %v412 = vld [vmem:[%s233 + $0x31] sm:$0xff]
      %v413 = vld [vmem:[%s233 + $0x41] sm:$0xff]
      %v414 = vld [vmem:[%s233 + $0x51] sm:$0xff]
      %v415 = vld [vmem:[%s233 + $0x61] sm:$0xff]
      %v416 = vld [vmem:[%s233 + $0x71] sm:$0xff]
      %s417 = scalar_lea.vmem %s237, 16
      %v418 = vld [vmem:[%s417] sm:$0xff]
      %v419 = vld [vmem:[%s417 + $0x8] sm:$0xff]
      %v421 = vsel %vm265, %v409, 0
      %v424 = vsel %vm265, %v410, 0
      %v427 = vsel %vm265, %v411, 0
      %v430 = vsel %vm265, %v412, 0
      %v433 = vsel %vm265, %v413, 0
      %v436 = vsel %vm265, %v414, 0
      %v439 = vsel %vm265, %v415, 0
      %v442 = vsel %vm265, %v416, 0
      %444 = vmatprep.subr.mxu0 0.0
      %445 = vmatpush1.msra.mxu0 0.0
      %446 = vmatprep.subr.mxu0 0.0
      %447 = vmatpush1.msra.mxu0 0.0
      %448 = vmatprep.subr.mxu0 0.0
      %449 = vmatpush1.msra.mxu0 0.0
      %450 = vmatprep.subr.mxu0 0.0
      %451 = vmatpush1.msra.mxu0 0.0
      %452 = vmatprep.subr.mxu0 0.0
      %453 = vmatpush1.msra.mxu0 0.0
      %454 = vmatprep.subr.mxu0 0.0
      %455 = vmatpush1.msra.mxu0 0.0
      %456 = vmatprep.subr.mxu0 0.0
      %457 = vmatpush1.msra.mxu0 0.0
      %458 = vmatprep.subr.mxu0 0.0
      %459 = vmatpush1.msra.mxu0 0.0
      %460 = vmatprep.subr.mxu0 0.0
      %461 = vmatpush1.msra.mxu0 0.0
      %462 = vmatprep.subr.mxu0 0.0
      %463 = vmatpush1.msra.mxu0 0.0
      %464 = vmatprep.subr.mxu0 0.0
      %465 = vmatpush1.msra.mxu0 0.0
      %466 = vmatprep.subr.mxu0 0.0
      %467 = vmatpush1.msra.mxu0 0.0
      %468 = vmatprep.subr.mxu0 0.0
      %469 = vmatpush1.msra.mxu0 0.0
      %470 = vmatprep.subr.mxu0 0.0
      %471 = vmatpush1.msra.mxu0 0.0
      %472 = vmatprep.subr.mxu0 0.0
      %473 = vmatpush1.msra.mxu0 %v419
      %474 = vmatprep.subr.mxu0 0.0
      %475 = vmatpush1.msra.mxu0 %v418
      %476 = vmatprep.subr.mxu0 0.0
      %477 = vmatpush2.msra.mxu0 0.0
      %478 = vmatprep.subr.mxu0 0.0
      %479 = vmatpush2.msra.mxu0 0.0
      %480 = vmatprep.subr.mxu0 0.0
      %481 = vmatpush2.msra.mxu0 0.0
      %482 = vmatprep.subr.mxu0 0.0
      %483 = vmatpush2.msra.mxu0 0.0
      %484 = vmatprep.subr.mxu0 0.0
      %485 = vmatpush2.msra.mxu0 0.0
      %486 = vmatprep.subr.mxu0 0.0
      %487 = vmatpush2.msra.mxu0 0.0
      %488 = vmatprep.subr.mxu0 0.0
      %489 = vmatpush2.msra.mxu0 0.0
      %490 = vmatprep.subr.mxu0 0.0
      %491 = vmatpush2.msra.mxu0 0.0
      %492 = vmatprep.subr.mxu0 0.0
      %493 = vmatpush2.msra.mxu0 0.0
      %494 = vmatprep.subr.mxu0 0.0
      %495 = vmatpush2.msra.mxu0 0.0
      %496 = vmatprep.subr.mxu0 0.0
      %497 = vmatpush2.msra.mxu0 0.0
      %498 = vmatprep.subr.mxu0 0.0
      %499 = vmatpush2.msra.mxu0 0.0
      %500 = vmatprep.subr.mxu0 0.0
      %501 = vmatpush2.msra.mxu0 0.0
      %502 = vmatprep.subr.mxu0 0.0
      %503 = vmatpush2.msra.mxu0 0.0
      %504 = vmatprep.subr.mxu0 0.0
      %505 = vmatpush2.msra.mxu0 0.0
      %506 = vmatprep.subr.mxu0 0.0
      %507 = vmatpush2.msra.mxu0 0.0
      %508 = vmatprep.mubr.f32.mxu0 0.0
      %509 = vmatmul.mubr.f32.gmra.mxu0 %v421
      %v510 = vpop.f32.mrf.mxu0
      %v511 = vadd.f32 0.0, %v510
      %v512 = vpop.f32.mrf.mxu0
      %513 = vmatprep.mubr.f32.mxu0 0.0
      %514 = vmatmul.mubr.f32.gmra.mxu0 %v424
      %v515 = vpop.f32.mrf.mxu0
      %v516 = vadd.f32 0.0, %v515
      %v517 = vpop.f32.mrf.mxu0
      %518 = vmatprep.mubr.f32.mxu0 0.0
      %519 = vmatmul.mubr.f32.gmra.mxu0 %v427
      %v520 = vpop.f32.mrf.mxu0
      %v521 = vadd.f32 0.0, %v520
      %v522 = vpop.f32.mrf.mxu0
      %523 = vmatprep.mubr.f32.mxu0 0.0
      %524 = vmatmul.mubr.f32.gmra.mxu0 %v430
      %v525 = vpop.f32.mrf.mxu0
      %v526 = vadd.f32 0.0, %v525
      %v527 = vpop.f32.mrf.mxu0
      %528 = vmatprep.mubr.f32.mxu0 0.0
      %529 = vmatmul.mubr.f32.gmra.mxu0 %v433
      %v530 = vpop.f32.mrf.mxu0
      %v531 = vadd.f32 0.0, %v530
      %v532 = vpop.f32.mrf.mxu0
      %533 = vmatprep.mubr.f32.mxu0 0.0
      %534 = vmatmul.mubr.f32.gmra.mxu0 %v436
      %v535 = vpop.f32.mrf.mxu0
      %v536 = vadd.f32 0.0, %v535
      %v537 = vpop.f32.mrf.mxu0
      %538 = vmatprep.mubr.f32.mxu0 0.0
      %539 = vmatmul.mubr.f32.gmra.mxu0 %v439
      %v540 = vpop.f32.mrf.mxu0
      %v541 = vadd.f32 0.0, %v540
      %v542 = vpop.f32.mrf.mxu0
      %543 = vmatprep.mubr.f32.mxu0 0.0
      %544 = vmatmul.mubr.f32.gmra.mxu0 %v442
      %v545 = vpop.f32.mrf.mxu0
      %v546 = vadd.f32 0.0, %v545
      %v547 = vpop.f32.mrf.mxu0
      %548 = vdwg.mxu0
      %v549 = vadd.f32 %v401, %v511
      %v550 = vadd.f32 %v402, %v516
      %v551 = vadd.f32 %v403, %v521
      %v552 = vadd.f32 %v404, %v526
      %v553 = vadd.f32 %v405, %v531
      %v554 = vadd.f32 %v406, %v536
      %v555 = vadd.f32 %v407, %v541
      %v556 = vadd.f32 %v408, %v546
      %s557 = scalar_lea.vmem %s233, 16
      %v558 = vld [vmem:[%s557] sm:$0xff]
      %v559 = vld [vmem:[%s557 + $0x10] sm:$0xff]
      %v560 = vld [vmem:[%s557 + $0x20] sm:$0xff]
      %v561 = vld [vmem:[%s557 + $0x30] sm:$0xff]
      %v562 = vld [vmem:[%s557 + $0x40] sm:$0xff]
      %v563 = vld [vmem:[%s557 + $0x50] sm:$0xff]
      %v564 = vld [vmem:[%s557 + $0x60] sm:$0xff]
      %v565 = vld [vmem:[%s557 + $0x70] sm:$0xff]
      %s566 = scalar_lea.vmem %s237, 32
      %v567 = vld [vmem:[%s566] sm:$0xff]
      %v568 = vld [vmem:[%s566 + $0x8] sm:$0xff]
      %v570 = vsel %vm265, %v558, 0
      %v573 = vsel %vm265, %v559, 0
      %v576 = vsel %vm265, %v560, 0
      %v579 = vsel %vm265, %v561, 0
      %v582 = vsel %vm265, %v562, 0
      %v585 = vsel %vm265, %v563, 0
      %v588 = vsel %vm265, %v564, 0
      %v591 = vsel %vm265, %v565, 0
      %593 = vmatprep.subr.mxu0 0.0
      %594 = vmatpush1.msra.mxu0 0.0
      %595 = vmatprep.subr.mxu0 0.0
      %596 = vmatpush1.msra.mxu0 0.0
      %597 = vmatprep.subr.mxu0 0.0
      %598 = vmatpush1.msra.mxu0 0.0
      %599 = vmatprep.subr.mxu0 0.0
      %600 = vmatpush1.msra.mxu0 0.0
      %601 = vmatprep.subr.mxu0 0.0
      %602 = vmatpush1.msra.mxu0 0.0
      %603 = vmatprep.subr.mxu0 0.0
      %604 = vmatpush1.msra.mxu0 0.0
      %605 = vmatprep.subr.mxu0 0.0
      %606 = vmatpush1.msra.mxu0 0.0
      %607 = vmatprep.subr.mxu0 0.0
      %608 = vmatpush1.msra.mxu0 0.0
      %609 = vmatprep.subr.mxu0 0.0
      %610 = vmatpush1.msra.mxu0 0.0
      %611 = vmatprep.subr.mxu0 0.0
      %612 = vmatpush1.msra.mxu0 0.0
      %613 = vmatprep.subr.mxu0 0.0
      %614 = vmatpush1.msra.mxu0 0.0
      %615 = vmatprep.subr.mxu0 0.0
      %616 = vmatpush1.msra.mxu0 0.0
      %617 = vmatprep.subr.mxu0 0.0
      %618 = vmatpush1.msra.mxu0 0.0
      %619 = vmatprep.subr.mxu0 0.0
      %620 = vmatpush1.msra.mxu0 0.0
      %621 = vmatprep.subr.mxu0 0.0
      %622 = vmatpush1.msra.mxu0 %v568
      %623 = vmatprep.subr.mxu0 0.0
      %624 = vmatpush1.msra.mxu0 %v567
      %625 = vmatprep.subr.mxu0 0.0
      %626 = vmatpush2.msra.mxu0 0.0
      %627 = vmatprep.subr.mxu0 0.0
      %628 = vmatpush2.msra.mxu0 0.0
      %629 = vmatprep.subr.mxu0 0.0
      %630 = vmatpush2.msra.mxu0 0.0
      %631 = vmatprep.subr.mxu0 0.0
      %632 = vmatpush2.msra.mxu0 0.0
      %633 = vmatprep.subr.mxu0 0.0
      %634 = vmatpush2.msra.mxu0 0.0
      %635 = vmatprep.subr.mxu0 0.0
      %636 = vmatpush2.msra.mxu0 0.0
      %637 = vmatprep.subr.mxu0 0.0
      %638 = vmatpush2.msra.mxu0 0.0
      %639 = vmatprep.subr.mxu0 0.0
      %640 = vmatpush2.msra.mxu0 0.0
      %641 = vmatprep.subr.mxu0 0.0
      %642 = vmatpush2.msra.mxu0 0.0
      %643 = vmatprep.subr.mxu0 0.0
      %644 = vmatpush2.msra.mxu0 0.0
      %645 = vmatprep.subr.mxu0 0.0
      %646 = vmatpush2.msra.mxu0 0.0
      %647 = vmatprep.subr.mxu0 0.0
      %648 = vmatpush2.msra.mxu0 0.0
      %649 = vmatprep.subr.mxu0 0.0
      %650 = vmatpush2.msra.mxu0 0.0
      %651 = vmatprep.subr.mxu0 0.0
      %652 = vmatpush2.msra.mxu0 0.0
      %653 = vmatprep.subr.mxu0 0.0
      %654 = vmatpush2.msra.mxu0 0.0
      %655 = vmatprep.subr.mxu0 0.0
      %656 = vmatpush2.msra.mxu0 0.0
      %657 = vmatprep.mubr.f32.mxu0 0.0
      %658 = vmatmul.mubr.f32.gmra.mxu0 %v570
      %v659 = vpop.f32.mrf.mxu0
      %v660 = vadd.f32 0.0, %v659
      %v661 = vpop.f32.mrf.mxu0
      %662 = vmatprep.mubr.f32.mxu0 0.0
      %663 = vmatmul.mubr.f32.gmra.mxu0 %v573
      %v664 = vpop.f32.mrf.mxu0
      %v665 = vadd.f32 0.0, %v664
      %v666 = vpop.f32.mrf.mxu0
      %667 = vmatprep.mubr.f32.mxu0 0.0
      %668 = vmatmul.mubr.f32.gmra.mxu0 %v576
      %v669 = vpop.f32.mrf.mxu0
      %v670 = vadd.f32 0.0, %v669
      %v671 = vpop.f32.mrf.mxu0
      %672 = vmatprep.mubr.f32.mxu0 0.0
      %673 = vmatmul.mubr.f32.gmra.mxu0 %v579
      %v674 = vpop.f32.mrf.mxu0
      %v675 = vadd.f32 0.0, %v674
      %v676 = vpop.f32.mrf.mxu0
      %677 = vmatprep.mubr.f32.mxu0 0.0
      %678 = vmatmul.mubr.f32.gmra.mxu0 %v582
      %v679 = vpop.f32.mrf.mxu0
      %v680 = vadd.f32 0.0, %v679
      %v681 = vpop.f32.mrf.mxu0
      %682 = vmatprep.mubr.f32.mxu0 0.0
      %683 = vmatmul.mubr.f32.gmra.mxu0 %v585
      %v684 = vpop.f32.mrf.mxu0
      %v685 = vadd.f32 0.0, %v684
      %v686 = vpop.f32.mrf.mxu0
      %687 = vmatprep.mubr.f32.mxu0 0.0
      %688 = vmatmul.mubr.f32.gmra.mxu0 %v588
      %v689 = vpop.f32.mrf.mxu0
      %v690 = vadd.f32 0.0, %v689
      %v691 = vpop.f32.mrf.mxu0
      %692 = vmatprep.mubr.f32.mxu0 0.0
      %693 = vmatmul.mubr.f32.gmra.mxu0 %v591
      %v694 = vpop.f32.mrf.mxu0
      %v695 = vadd.f32 0.0, %v694
      %v696 = vpop.f32.mrf.mxu0
      %697 = vdwg.mxu0
      %v698 = vadd.f32 %v549, %v660
      %v699 = vadd.f32 %v550, %v665
      %v700 = vadd.f32 %v551, %v670
      %v701 = vadd.f32 %v552, %v675
      %v702 = vadd.f32 %v553, %v680
      %v703 = vadd.f32 %v554, %v685
      %v704 = vadd.f32 %v555, %v690
      %v705 = vadd.f32 %v556, %v695
      %v706 = vld [vmem:[%s557 + $0x1] sm:$0xff]
      %v707 = vld [vmem:[%s557 + $0x11] sm:$0xff]
      %v708 = vld [vmem:[%s557 + $0x21] sm:$0xff]
      %v709 = vld [vmem:[%s557 + $0x31] sm:$0xff]
      %v710 = vld [vmem:[%s557 + $0x41] sm:$0xff]
      %v711 = vld [vmem:[%s557 + $0x51] sm:$0xff]
      %v712 = vld [vmem:[%s557 + $0x61] sm:$0xff]
      %v713 = vld [vmem:[%s557 + $0x71] sm:$0xff]
      %s714 = scalar_lea.vmem %s237, 48
      %v715 = vld [vmem:[%s714] sm:$0xff]
      %v716 = vld [vmem:[%s714 + $0x8] sm:$0xff]
      %v718 = vsel %vm265, %v706, 0
      %v721 = vsel %vm265, %v707, 0
      %v724 = vsel %vm265, %v708, 0
      %v727 = vsel %vm265, %v709, 0
      %v730 = vsel %vm265, %v710, 0
      %v733 = vsel %vm265, %v711, 0
      %v736 = vsel %vm265, %v712, 0
      %v739 = vsel %vm265, %v713, 0
      %741 = vmatprep.subr.mxu0 0.0
      %742 = vmatpush1.msra.mxu0 0.0
      %743 = vmatprep.subr.mxu0 0.0
      %744 = vmatpush1.msra.mxu0 0.0
      %745 = vmatprep.subr.mxu0 0.0
      %746 = vmatpush1.msra.mxu0 0.0
      %747 = vmatprep.subr.mxu0 0.0
      %748 = vmatpush1.msra.mxu0 0.0
      %749 = vmatprep.subr.mxu0 0.0
      %750 = vmatpush1.msra.mxu0 0.0
      %751 = vmatprep.subr.mxu0 0.0
      %752 = vmatpush1.msra.mxu0 0.0
      %753 = vmatprep.subr.mxu0 0.0
      %754 = vmatpush1.msra.mxu0 0.0
      %755 = vmatprep.subr.mxu0 0.0
      %756 = vmatpush1.msra.mxu0 0.0
      %757 = vmatprep.subr.mxu0 0.0
      %758 = vmatpush1.msra.mxu0 0.0
      %759 = vmatprep.subr.mxu0 0.0
      %760 = vmatpush1.msra.mxu0 0.0
      %761 = vmatprep.subr.mxu0 0.0
      %762 = vmatpush1.msra.mxu0 0.0
      %763 = vmatprep.subr.mxu0 0.0
      %764 = vmatpush1.msra.mxu0 0.0
      %765 = vmatprep.subr.mxu0 0.0
      %766 = vmatpush1.msra.mxu0 0.0
      %767 = vmatprep.subr.mxu0 0.0
      %768 = vmatpush1.msra.mxu0 0.0
      %769 = vmatprep.subr.mxu0 0.0
      %770 = vmatpush1.msra.mxu0 %v716
      %771 = vmatprep.subr.mxu0 0.0
      %772 = vmatpush1.msra.mxu0 %v715
      %773 = vmatprep.subr.mxu0 0.0
      %774 = vmatpush2.msra.mxu0 0.0
      %775 = vmatprep.subr.mxu0 0.0
      %776 = vmatpush2.msra.mxu0 0.0
      %777 = vmatprep.subr.mxu0 0.0
      %778 = vmatpush2.msra.mxu0 0.0
      %779 = vmatprep.subr.mxu0 0.0
      %780 = vmatpush2.msra.mxu0 0.0
      %781 = vmatprep.subr.mxu0 0.0
      %782 = vmatpush2.msra.mxu0 0.0
      %783 = vmatprep.subr.mxu0 0.0
      %784 = vmatpush2.msra.mxu0 0.0
      %785 = vmatprep.subr.mxu0 0.0
      %786 = vmatpush2.msra.mxu0 0.0
      %787 = vmatprep.subr.mxu0 0.0
      %788 = vmatpush2.msra.mxu0 0.0
      %789 = vmatprep.subr.mxu0 0.0
      %790 = vmatpush2.msra.mxu0 0.0
      %791 = vmatprep.subr.mxu0 0.0
      %792 = vmatpush2.msra.mxu0 0.0
      %793 = vmatprep.subr.mxu0 0.0
      %794 = vmatpush2.msra.mxu0 0.0
      %795 = vmatprep.subr.mxu0 0.0
      %796 = vmatpush2.msra.mxu0 0.0
      %797 = vmatprep.subr.mxu0 0.0
      %798 = vmatpush2.msra.mxu0 0.0
      %799 = vmatprep.subr.mxu0 0.0
      %800 = vmatpush2.msra.mxu0 0.0
      %801 = vmatprep.subr.mxu0 0.0
      %802 = vmatpush2.msra.mxu0 0.0
      %803 = vmatprep.subr.mxu0 0.0
      %804 = vmatpush2.msra.mxu0 0.0
      %805 = vmatprep.mubr.f32.mxu0 0.0
      %806 = vmatmul.mubr.f32.gmra.mxu0 %v718
      %v807 = vpop.f32.mrf.mxu0
      %v808 = vadd.f32 0.0, %v807
      %v809 = vpop.f32.mrf.mxu0
      %810 = vmatprep.mubr.f32.mxu0 0.0
      %811 = vmatmul.mubr.f32.gmra.mxu0 %v721
      %v812 = vpop.f32.mrf.mxu0
      %v813 = vadd.f32 0.0, %v812
      %v814 = vpop.f32.mrf.mxu0
      %815 = vmatprep.mubr.f32.mxu0 0.0
      %816 = vmatmul.mubr.f32.gmra.mxu0 %v724
      %v817 = vpop.f32.mrf.mxu0
      %v818 = vadd.f32 0.0, %v817
      %v819 = vpop.f32.mrf.mxu0
      %820 = vmatprep.mubr.f32.mxu0 0.0
      %821 = vmatmul.mubr.f32.gmra.mxu0 %v727
      %v822 = vpop.f32.mrf.mxu0
      %v823 = vadd.f32 0.0, %v822
      %v824 = vpop.f32.mrf.mxu0
      %825 = vmatprep.mubr.f32.mxu0 0.0
      %826 = vmatmul.mubr.f32.gmra.mxu0 %v730
      %v827 = vpop.f32.mrf.mxu0
      %v828 = vadd.f32 0.0, %v827
      %v829 = vpop.f32.mrf.mxu0
      %830 = vmatprep.mubr.f32.mxu0 0.0
      %831 = vmatmul.mubr.f32.gmra.mxu0 %v733
      %v832 = vpop.f32.mrf.mxu0
      %v833 = vadd.f32 0.0, %v832
      %v834 = vpop.f32.mrf.mxu0
      %835 = vmatprep.mubr.f32.mxu0 0.0
      %836 = vmatmul.mubr.f32.gmra.mxu0 %v736
      %v837 = vpop.f32.mrf.mxu0
      %v838 = vadd.f32 0.0, %v837
      %v839 = vpop.f32.mrf.mxu0
      %840 = vmatprep.mubr.f32.mxu0 0.0
      %841 = vmatmul.mubr.f32.gmra.mxu0 %v739
      %v842 = vpop.f32.mrf.mxu0
      %v843 = vadd.f32 0.0, %v842
      %v844 = vpop.f32.mrf.mxu0
      %845 = vdwg.mxu0
      %v846 = vadd.f32 %v698, %v808
      %v847 = vadd.f32 %v699, %v813
      %v848 = vadd.f32 %v700, %v818
      %v849 = vadd.f32 %v701, %v823
      %v850 = vadd.f32 %v702, %v828
      %v851 = vadd.f32 %v703, %v833
      %v852 = vadd.f32 %v704, %v838
      %v853 = vadd.f32 %v705, %v843
      %v854 = vmax.f32 %v846, 0.0
      %v855 = vmax.f32 %v847, 0.0
      %v856 = vmax.f32 %v848, 0.0
      %v857 = vmax.f32 %v849, 0.0
      %v858 = vmax.f32 %v850, 0.0
      %v859 = vmax.f32 %v851, 0.0
      %v860 = vmax.f32 %v852, 0.0
      %v861 = vmax.f32 %v853, 0.0
      %862 = vst [vmem:[%s252] sm:$0xff] %v854
      %863 = vst [vmem:[%s252 + $0x8] sm:$0xff] %v855
      %864 = vst [vmem:[%s252 + $0x10] sm:$0xff] %v856
      %865 = vst [vmem:[%s252 + $0x18] sm:$0xff] %v857
      %866 = vst [vmem:[%s252 + $0x20] sm:$0xff] %v858
      %867 = vst [vmem:[%s252 + $0x28] sm:$0xff] %v859
      %868 = vst [vmem:[%s252 + $0x30] sm:$0xff] %v860
      %869 = vst [vmem:[%s252 + $0x38] sm:$0xff] %v861
      %s870 = smul.u32 8, %s21
      %p871 = scmp.lt.s32.totalorder %s20, 1
      %s872 = scalar_select %p871, %s20, 1
      %p873 = scmp.lt.s32.totalorder %s870, 7
      %s874 = scalar_select %p873, %s870, 7
      %p875 = scmp.lt.s32.totalorder %s19, 0
      %s876 = scalar_select %p875, %s19, 0
      %s877 = sadd.s32 %s876, %s874
      %s878 = smul.addr %s872, 8
      %s879 = sadd.s32 %s877, %s878
      %s880 = smul.addr %s879, 8
      %s881 = scalar_lea.vmem %s3, %s880
      // Predicated region
      $region33: #{down_block_forward.1} parent=31 // pred_check
        %p882 = pneg %p135
      $region34: #{down_block_forward.1} parent=31 // pred_check_branch
        %884 = sbr.rel (%p882) target = $region36
      $region35: #{down_block_forward.1} parent=31 // pred_region
        %s885 = smul.u32 8, %s21
      $region36: #{down_block_forward.1} parent=31 // pred_fallthru
        _
    $region32: #{down_block_forward.1} parent=5 // pred_fallthru
      _
    %p886 = scmp.le.s32.totalorder 2, %s9
    // Predicated region
    $region37: #{down_block_forward.1} parent=5 // pred_check
      %p887 = pneg %p886
    $region38: #{down_block_forward.1} parent=5 // pred_check_branch
      %889 = sbr.rel (%p887) target = $region40
    $region39: #{down_block_forward.1} parent=5 // pred_region
      %s890 = ssub.s32 %s9, 2
      // Predicated region
      $region41: #{down_block_forward.1} parent=39 // pred_check
        %p891 = pneg %p141
      $region42: #{down_block_forward.1} parent=39 // pred_check_branch
        %893 = sbr.rel (%p891) target = $region44
      $region43: #{down_block_forward.1} parent=39 // pred_region
        %s894 = smul.u32 8, %s24
        %p895 = scmp.lt.s32.totalorder %s23, 1
        %s896 = scalar_select %p895, %s23, 1
        %p897 = scmp.lt.s32.totalorder %s894, 7
        %s898 = scalar_select %p897, %s894, 7
        %p899 = scmp.lt.s32.totalorder %s22, 0
        %s900 = scalar_select %p899, %s22, 0
        %s901 = sadd.s32 %s900, %s898
        %s902 = smul.addr %s896, 8
        %s903 = sadd.s32 %s901, %s902
        %s904 = smul.addr %s903, 8
        %s905 = scalar_lea.vmem %s3, %s904
      $region44: #{down_block_forward.1} parent=39 // pred_fallthru
        _
    $region40: #{down_block_forward.1} parent=5 // pred_fallthru
      _
  $region6: #{down_block_forward.1} parent=0 // loop_footer
    %s13 = sadd.s32 1, %s9
  $region7: #{down_block_forward.1} parent=0 // loop_footer_branch
    %8 = sbr.rel target = $region3
  $region8: #{down_block_forward.1} parent=0 // loop_exit
    _

</llo_original>
